<compile_context>
chip_gen: v5e
topology: v5e:2x2
jax: 0.10.0
libtpu: 0.0.40
codegen_flags: <defaults>
</compile_context>

<pallas_src>
import math

import jax
import jax.numpy as jnp
from jax.experimental import pallas as pl
from jax.experimental.pallas import tpu as pltpu


# ----------------------------------------------------------------------------
# Kernels
# ----------------------------------------------------------------------------

def _resident_kernel(x_ref, w_ref, b_ref, o_ref):
    # x: (tm, K) bf16, w: (K, Np) bf16 (resident), b: (1, Np) f32, o: (tm, Np) f32.
    o_ref[...] = (jnp.dot(x_ref[...], w_ref[...],
                          preferred_element_type=jnp.float32)
                  + b_ref[...]).astype(o_ref.dtype)


def _tiled_kernel(x_ref, w_ref, b_ref, o_ref):
    # K-reduction matmul; o_ref (f32) is revisited across k, so accumulate
    # directly into it (no scratch).  Initialize with the bias at k == 0.
    k = pl.program_id(2)

    @pl.when(k == 0)
    def _():
        o_ref[...] = jnp.broadcast_to(b_ref[...], o_ref.shape).astype(o_ref.dtype)

    o_ref[...] += jnp.dot(x_ref[...], w_ref[...],
                          preferred_element_type=jnp.float32)


# ----------------------------------------------------------------------------
# Wrapper
# ----------------------------------------------------------------------------

_VMEM_LIMIT = 48 * 1024 * 1024           # safe on v7x (64 MiB physical)
_RESIDENT_W_BYTES = 4 * 1024 * 1024      # weight-resident path threshold


def _round_up(x, m):
    return ((x + m - 1) // m) * m


def _pick_tm(m, pref):
    """M tile: multiple of 16 (bf16 sublane packing), >=2 blocks when possible
    so the 'parallel' M axis can be sharded across v7x's two TensorCores."""
    if m <= 16:
        return m                          # full-array block
    return min(pref, _round_up((m + 1) // 2, 16))


def linear_pallas(x2d, w, b2d):
    """Computes x2d @ w + b2d  (any scaling is pre-folded into w/b by the caller).

    x2d: (M, K) bf16/f32, w: (K, N), b2d: (1, N) f32. Returns (M, N) f32.
    """
    M, K = x2d.shape
    Kw, N = w.shape
    assert K == Kw, (K, Kw)
    assert b2d.shape == (1, N), b2d.shape

    w_bytes = w.size * w.dtype.itemsize

    if w_bytes <= _RESIDENT_W_BYTES and K <= 2048:
        # ---- weight-resident fast path: 1-D grid over M only ----
        tm = _pick_tm(M, 512)
        grid = (pl.cdiv(M, tm),)
        return pl.pallas_call(
            _resident_kernel,
            out_shape=jax.ShapeDtypeStruct((M, N), jnp.float32),
            grid_spec=pltpu.PrefetchScalarGridSpec(
                num_scalar_prefetch=0,
                grid=grid,
                in_specs=[
                    pl.BlockSpec((tm, K), lambda i: (i, 0)),
                    pl.BlockSpec((K, N), lambda i: (0, 0)),   # resident weight
                    pl.BlockSpec((1, N), lambda i: (0, 0)),   # resident bias
                ],
                out_specs=pl.BlockSpec((tm, N), lambda i: (i, 0)),
            ),
            compiler_params=pltpu.CompilerParams(
                dimension_semantics=("parallel",),
                vmem_limit_bytes=_VMEM_LIMIT,
            ),
        )(x2d, w, b2d)

    # ---- tiled fallback: (M, N, K) grid with K-reduction into the output ----
    tm = _pick_tm(M, 256)
    tn = min(512, _round_up(N, 128))
    tk = min(512, _round_up(K, 128))
    Kp = _round_up(K, tk)                 # K must be zero-padded (reduction axis)
    xp = x2d if Kp == K else jnp.pad(x2d, ((0, 0), (0, Kp - K)))
    wp = w if Kp == K else jnp.pad(w, ((0, Kp - K), (0, 0)))

    grid = (pl.cdiv(M, tm), pl.cdiv(N, tn), Kp // tk)
    return pl.pallas_call(
        _tiled_kernel,
        out_shape=jax.ShapeDtypeStruct((M, N), jnp.float32),
        grid_spec=pltpu.PrefetchScalarGridSpec(
            num_scalar_prefetch=0,
            grid=grid,
            in_specs=[
                pl.BlockSpec((tm, tk), lambda i, j, k: (i, k)),
                pl.BlockSpec((tk, tn), lambda i, j, k: (k, j)),
                pl.BlockSpec((1, tn), lambda i, j, k: (0, j)),
            ],
            out_specs=pl.BlockSpec((tm, tn), lambda i, j, k: (i, j)),
        ),
        compiler_params=pltpu.CompilerParams(
            dimension_semantics=("parallel", "parallel", "arbitrary"),
            vmem_limit_bytes=_VMEM_LIMIT,
        ),
    )(xp, wp, b2d)


# ----------------------------------------------------------------------------
# Embeddings module (params in plain JAX, hot path in Pallas)
# ----------------------------------------------------------------------------

class Embeddings:
    def __init__(self, freq_size, d_model, key):
        self.freq_size = freq_size
        self.d_model = d_model
        self.scale = math.sqrt(d_model)

        # nn.Linear(freq_size, d_model): weight (d_model, freq_size), bias (d_model,)
        # init ~ U(-1/sqrt(fan_in), 1/sqrt(fan_in)) like PyTorch.
        bound = 1.0 / math.sqrt(freq_size)
        kw, kb = jax.random.split(key)
        w = jax.random.uniform(kw, (d_model, freq_size), jnp.float32, -bound, bound)
        b = jax.random.uniform(kb, (d_model,), jnp.float32, -bound, bound)

        # Fold sqrt(d_model) into the params, pre-transpose to (K, N), pad N to a
        # lane-dense multiple of 128, and store the matmul operand in bf16 — all
        # done exactly once at init (nothing static happens per forward call).
        self.n_pad = _round_up(d_model, 128)
        w_t = w.T * self.scale                                   # (K, N) f32
        w_t = jnp.pad(w_t, ((0, 0), (0, self.n_pad - d_model)))
        self.w_t = w_t.astype(jnp.bfloat16)                      # (K, Np) bf16
        b_s = (b * self.scale).reshape(1, d_model)
        self.b = jnp.pad(b_s, ((0, 0), (0, self.n_pad - d_model)))  # (1, Np) f32

        # f32 copies kept only for the reference check.
        self._w_f32 = w
        self._b_f32 = b

    def __call__(self, x):
        # x: (..., freq_size) -> (..., d_model), matching nn.Linear semantics.
        lead = x.shape[:-1]
        M = math.prod(lead) if lead else 1
        x2d = x.reshape(M, self.freq_size).astype(jnp.bfloat16)
        y = linear_pallas(x2d, self.w_t, self.b)                 # (M, Np) f32
        if self.n_pad != self.d_model:
            y = y[:, :self.d_model]
        return y.reshape(*lead, self.d_model)


# ----------------------------------------------------------------------------
# Self-test
# ----------------------------------------------------------------------------

if __name__ == "__main__":
    # Small shapes consistent with the module: batch=2, seq=8, freq=16, d_model=32.
    B, S, freq_size, d_model = 2, 8, 16, 32

    root = jax.random.PRNGKey(0)
    k_x, k_params, k_big = jax.random.split(root, 3)
    x = jax.random.normal(k_x, (B, S, freq_size), jnp.float32)

    emb = Embeddings(freq_size, d_model, k_params)
    out = jax.block_until_ready(emb(x))
    assert out.shape == (B, S, d_model)

    # Reference with the SAME bf16-rounded operands (f32 accumulation) -> tight tol.
    x2d_r = x.reshape(-1, freq_size).astype(jnp.bfloat16).astype(jnp.float32)
    w_r = emb.w_t[:, :d_model].astype(jnp.float32)
    ref = (jnp.matmul(x2d_r, w_r, precision=jax.lax.Precision.HIGHEST)
           + emb.b[0, :d_model]).reshape(B, S, d_model)
    assert jnp.allclose(out, ref, atol=1e-4, rtol=1e-4), "small-shape mismatch"

    # Module-semantics sanity check vs. pure f32 math (loose: bf16 operand rounding).
    ref_f32 = (jnp.matmul(x.reshape(-1, freq_size), emb._w_f32.T,
                          precision=jax.lax.Precision.HIGHEST)
               + emb._b_f32) * emb.scale
    assert jnp.allclose(out.reshape(-1, d_model), ref_f32, atol=1e-1, rtol=1e-1), \
        "f32 semantics mismatch"

    # Exercise the tiled fallback: ragged M, zero-padded K, multi-step K reduction.
    Mb, Kb, Nb = 600, 3000, 384
    xb = jax.random.normal(k_big, (Mb, Kb), jnp.float32).astype(jnp.bfloat16)
    kw2, kb2 = jax.random.split(jax.random.fold_in(k_params, 1))
    wb = (jax.random.normal(kw2, (Kb, Nb), jnp.float32) * 0.02).astype(jnp.bfloat16)
    bb = (jax.random.normal(kb2, (Nb,), jnp.float32) * 0.02).reshape(1, Nb)
    outb = jax.block_until_ready(linear_pallas(xb, wb, bb))
    refb = (jnp.matmul(xb.astype(jnp.float32), wb.astype(jnp.float32),
                       precision=jax.lax.Precision.HIGHEST) + bb)
    assert outb.shape == (Mb, Nb)
    assert jnp.allclose(outb, refb, atol=1e-2, rtol=1e-2), "tiled-path mismatch"

    print("KERNEL_OK")
</pallas_src>

<mosaic_0001>
module attributes {stable_mosaic.version = 11 : i64} {
  func.func @_resident_kernel(%arg0: i32, %arg1: memref<16x16xbf16, #tpu.memory_space<vmem>>, %arg2: memref<16x128xbf16, #tpu.memory_space<vmem>>, %arg3: memref<1x128xf32, #tpu.memory_space<vmem>>, %arg4: memref<16x128xf32, #tpu.memory_space<vmem>>) attributes {dimension_semantics = [#tpu.dimension_semantics<parallel>], iteration_bounds = array<i64: 1>, scalar_prefetch = 0 : i64, scratch_operands = 0 : i64, tpu.core_type = #tpu.core_type<tc>, window_params = [{transform_indices = @transform_0, window_bounds = array<i64: 16, 16>}, {pipeline_mode = #tpu.pipeline_mode<synchronous>, transform_indices = @transform_1, window_bounds = array<i64: 16, 128>}, {pipeline_mode = #tpu.pipeline_mode<synchronous>, transform_indices = @transform_2, window_bounds = array<i64: 1, 128>}, {transform_indices = @transform_3, window_bounds = array<i64: 16, 128>}]} {
    %c0 = arith.constant 0 : index
    %c0_0 = arith.constant 0 : index
    %0 = vector.load %arg1[%c0, %c0_0] : memref<16x16xbf16, #tpu.memory_space<vmem>>, vector<16x16xbf16>
    %c0_1 = arith.constant 0 : index
    %c0_2 = arith.constant 0 : index
    %1 = vector.load %arg2[%c0_1, %c0_2] : memref<16x128xbf16, #tpu.memory_space<vmem>>, vector<16x128xbf16>
    %cst = arith.constant dense<0.000000e+00> : vector<16x128xf32>
    %2 = tpu.matmul %0, %1, %cst {dimension_numbers = #tpu.dot_dimension_numbers<[1], [0], [0], [1], [0, 0, 1, 1], [], []>} : vector<16x16xbf16>, vector<16x128xbf16>, vector<16x128xf32> -> vector<16x128xf32>
    %c0_3 = arith.constant 0 : index
    %c0_4 = arith.constant 0 : index
    %3 = vector.load %arg3[%c0_3, %c0_4] : memref<1x128xf32, #tpu.memory_space<vmem>>, vector<1x128xf32>
    %4 = vector.broadcast %3 : vector<1x128xf32> to vector<16x128xf32>
    %5 = arith.addf %2, %4 : vector<16x128xf32>
    %c0_5 = arith.constant 0 : index
    %c0_6 = arith.constant 0 : index
    %6 = vector.load %arg4[%c0_5, %c0_6] : memref<16x128xf32, #tpu.memory_space<vmem>>, vector<16x128xf32>
    tpu.vector_store %arg4[%c0_5, %c0_6], %5 {strides = array<i32>} : memref<16x128xf32, #tpu.memory_space<vmem>>, vector<16x128xf32>,
    return
  }
  func.func @transform_0(%arg0: i32) -> (i32, i32) {
    %c0_i32 = arith.constant 0 : i32
    %c0_i32_0 = arith.constant 0 : i32
    return %arg0, %c0_i32 : i32, i32
  }
  func.func @transform_1(%arg0: i32) -> (i32, i32) {
    %c0_i32 = arith.constant 0 : i32
    %c0_i32_0 = arith.constant 0 : i32
    %c0_i32_1 = arith.constant 0 : i32
    return %c0_i32, %c0_i32_0 : i32, i32
  }
  func.func @transform_2(%arg0: i32) -> (i32, i32) {
    %c0_i32 = arith.constant 0 : i32
    %c0_i32_0 = arith.constant 0 : i32
    %c0_i32_1 = arith.constant 0 : i32
    return %c0_i32, %c0_i32_0 : i32, i32
  }
  func.func @transform_3(%arg0: i32) -> (i32, i32) {
    %c0_i32 = arith.constant 0 : i32
    %c0_i32_0 = arith.constant 0 : i32
    return %arg0, %c0_i32 : i32, i32
  }
}

</mosaic_0001>

<llo_original>
// kernel: tpu_custom_call.1
$region0: #{tpu_custom_call.1}
  #allocation0 [shape = 'u32[]', space=smem, size = 0x4, offset = 0x4, fixed_abs, tag = 'smem constant byte address 0x4 - core index']
  #allocation1 [shape = 'u32[72,128]{1,0:T(1,128)}', space=vmem, size = 0x9000, scoped, tag = 'internal scratch']
  %s0 = inlined_call_operand.hbm [shape: bf16[16,16], index: 0, kind: input, shape index: {}]
  %s1 = inlined_call_operand.hbm [shape: bf16[16,128], index: 1, kind: input, shape index: {}]
  %s2 = inlined_call_operand.vmem [shape: f32[1,128], index: 2, kind: input, shape index: {}]
  %s3 = inlined_call_operand.hbm [shape: f32[16,128], index: 3, kind: output, shape index: {}]
  %s4 = sld [smem:[#allocation0]]
  $region30: #{tpu_custom_call.1} parent=0
    _
  %s6 = ssub.s32 1, %s4
  %s7 = scalar_select 0, %s6, %s4
  $region1: #{tpu_custom_call.1} parent=0
    #allocation2 [shape = 'u8[4096]{0}', space=vmem, size = 0x1000, scoped, tag = 'input window, operand 0, single buffered']
    #allocation3 [shape = 's32[1]{0}', space=sflag, size = 0x4, scoped, tag = 'scoped memory for tpu_custom_call.1']
    #allocation4 [shape = 's32[1]{0}', space=sflag, size = 0x4, scoped, tag = 'scoped memory for tpu_custom_call.1']
    #allocation5 [shape = 'u8[4096]{0}', space=vmem, size = 0x1000, scoped, tag = 'input window, operand 1, single buffered']
    #allocation6 [shape = 's32[1]{0}', space=sflag, size = 0x4, scoped, tag = 'scoped memory for tpu_custom_call.1']
    #allocation7 [shape = 'u8[8192]{0}', space=vmem, size = 0x2000, scoped, tag = 'output window, operand 0, single buffered']
    %8 = vsyncpa [#allocation3], 0
    %9 = vsyncpa [#allocation6], 0
    %10 = vsyncpa [#allocation4], 0
    // Predicated region
    $region2: #{tpu_custom_call.1} parent=1 // pred_check
      _
    $region3: #{tpu_custom_call.1} parent=1 // pred_check_branch
      %12 = sbr.rel (0) target = $region5
    $region4: #{tpu_custom_call.1} parent=1 // pred_region
      %14 = vsyncadd [#allocation3], 0
      %s15 = sshll.u32 %s0, 4
      %s16 = int_to_ptr.hbm [resolvable:$true] %s15
      %s17 = sshll.u32 [#allocation2], 4
      %s18 = int_to_ptr.vmem [resolvable:$true] %s17
      %23 = dma.hbm_to_vmem [thread:$0]  %s16, 128, %s18, [#allocation3], 64, 64, 4
    $region5: #{tpu_custom_call.1} parent=1 // pred_fallthru
      _
    // Predicated region
    $region6: #{tpu_custom_call.1} parent=1 // pred_check
      _
    $region7: #{tpu_custom_call.1} parent=1 // pred_check_branch
      %25 = sbr.rel (0) target = $region9
    $region8: #{tpu_custom_call.1} parent=1 // pred_region
      %27 = vsyncadd [#allocation6], 0
      %s28 = sshll.u32 %s1, 4
      %s29 = int_to_ptr.hbm [resolvable:$true] %s28
      %s30 = sshll.u32 [#allocation5], 4
      %s31 = int_to_ptr.vmem [resolvable:$true] %s30
      %36 = dma.hbm_to_vmem [thread:$0]  %s29, 128, %s31, [#allocation6], 64, 64, 4
    $region9: #{tpu_custom_call.1} parent=1 // pred_fallthru
      _
    // Predicated region
    $region10: #{tpu_custom_call.1} parent=1 // pred_check
      _
    $region11: #{tpu_custom_call.1} parent=1 // pred_check_branch
      %38 = sbr.rel (0) target = $region13
    $region12: #{tpu_custom_call.1} parent=1 // pred_region
      _
    $region13: #{tpu_custom_call.1} parent=1 // pred_fallthru
      _
    // Predicated region
    $region14: #{tpu_custom_call.1} parent=1 // pred_check
      _
    $region15: #{tpu_custom_call.1} parent=1 // pred_check_branch
      %40 = sbr.rel (0) target = $region17
    $region16: #{tpu_custom_call.1} parent=1 // pred_region
      %42 = dma.done [#allocation3], 128
    $region17: #{tpu_custom_call.1} parent=1 // pred_fallthru
      _
    // Predicated region
    $region18: #{tpu_custom_call.1} parent=1 // pred_check
      _
    $region19: #{tpu_custom_call.1} parent=1 // pred_check_branch
      %44 = sbr.rel (0) target = $region21
    $region20: #{tpu_custom_call.1} parent=1 // pred_region
      %46 = dma.done [#allocation6], 128
    $region21: #{tpu_custom_call.1} parent=1 // pred_fallthru
      _
    %v48 = vld [vmem:[#allocation2] sm:$0xf]
    %v49 = vld [vmem:[#allocation2 + $0x4] sm:$0xf]
    %v50 = vld [vmem:[#allocation5] sm:$0xf]
    %v51 = vld [vmem:[#allocation5 + $0x4] sm:$0xf]
    %v52 = vld [vmem:[%s2] sm:$0x1]
    %v54 = vperm.slane %v52, 0
    %v58 = vunpack.c.l.b16 %v48
    %v59 = vunpack.c.l.b16 %v49
    %v60 = vpack.c.b16 %v59, %v58
    %v63 = vunpack.c.l.b16 %v50
    %v64 = vunpack.c.l.b16 %v51
    %v65 = vpack.c.b16 %v64, %v63
    %vm67 = vcmask 130048
    %v69 = vsel %vm67, %v60, 0
    %71 = vmatpush.bf16.msra.mxu0 0
    %72 = vmatpush.bf16.msra.mxu0 0
    %73 = vmatpush.bf16.msra.mxu0 0
    %74 = vmatpush.bf16.msra.mxu0 0
    %75 = vmatpush.bf16.msra.mxu0 0
    %76 = vmatpush.bf16.msra.mxu0 0
    %77 = vmatpush.bf16.msra.mxu0 0
    %78 = vmatpush.bf16.msra.mxu0 %v65
    %79 = vmatmul.bf16.gmra.mxu0 %v69
    %v80 = vpop.f32.mrf.mxu0
    %v81 = vadd.f32 %v54, %v80
    %v82 = vpop.f32.mrf.mxu0
    %v83 = vadd.f32 %v54, %v82
    %84 = vdwg.mxu0
    %85 = vst [vmem:[#allocation7] sm:$0xff] %v81
    %86 = vst [vmem:[#allocation7 + $0x8] sm:$0xff] %v83
    // Predicated region
    $region22: #{tpu_custom_call.1} parent=1 // pred_check
      _
    $region23: #{tpu_custom_call.1} parent=1 // pred_check_branch
      %88 = sbr.rel (0) target = $region25
    $region24: #{tpu_custom_call.1} parent=1 // pred_region
      %90 = vsyncadd [#allocation4], 0
      %s91 = sshll.u32 [#allocation7], 4
      %s92 = int_to_ptr.vmem [resolvable:$true] %s91
      %s93 = sshll.u32 %s3, 4
      %s94 = int_to_ptr.hbm [resolvable:$true] %s93
      %99 = dma.vmem_to_hbm [thread:$0]  %s92, 256, %s94, [#allocation4], 128, 128, 8
    $region25: #{tpu_custom_call.1} parent=1 // pred_fallthru
      _
    // Predicated region
    $region26: #{tpu_custom_call.1} parent=1 // pred_check
      _
    $region27: #{tpu_custom_call.1} parent=1 // pred_check_branch
      %101 = sbr.rel (0) target = $region29
    $region28: #{tpu_custom_call.1} parent=1 // pred_region
      %103 = dma.done [#allocation4], 256
    $region29: #{tpu_custom_call.1} parent=1 // pred_fallthru
      _
    %104 = vsyncpa [#allocation3], 1
    %105 = vsyncpa [#allocation6], 1
    %106 = vsyncpa [#allocation4], 1

</llo_original>
